<compile_context>
chip_gen: v6e
topology: v6e:2x2x1
jax: 0.10.0
libtpu: 0.0.40
codegen_flags: <defaults>
</compile_context>

<pallas_src>
import functools

import jax
import jax.numpy as jnp
from jax.experimental import pallas as pl
from jax.experimental.pallas import tpu as pltpu

NEG_SLOPE = 0.01   # torch.nn.LeakyReLU default
HALO = 128         # per-side halo on the time axis (lane-aligned guard zone)


def _round_up(x, m):
    return (x + m - 1) // m * m


# ------------------------- Pallas kernel ------------------------------------
def _residual_block_kernel(x_ref, w_ref, b_ref, o_ref, *,
                           C, K, W_in, T_tile, L, group_dilations):
    """Fully fused ResidualBlock on one (batch, time-tile) grid cell.

    x_ref: (1, 1, C, W_in)  f32  haloed input tile (time on the lane axis)
    w_ref: (n_conv, C, K*C) bf16 weight-normalized, im2col-reshaped weights
    b_ref: (n_conv, C, 1)   f32  biases
    o_ref: (1, C, T_tile)        output tile (center window of the input tile)
    """
    i = pl.program_id(1)
    x0 = x_ref[0, 0]                                           # (C, W_in) f32

    # Global time index of every lane in this extended tile. Positions outside
    # [0, L) must be treated as zero before every conv — this reproduces the
    # per-conv 'same' zero padding of the unfused module.
    g = jax.lax.broadcasted_iota(jnp.int32, (C, W_in), 1) + (i * T_tile - HALO)
    in_signal = jnp.logical_and(g >= 0, g < L)

    xr = x0                                                    # running residual
    conv_idx = 0
    for dils in group_dilations:                               # static structure
        act = xr
        for d in dils:
            pad = d * (K - 1) // 2
            # LeakyReLU (f32 VPU) + zero outside the real signal.
            y = jnp.where(act >= 0, act, NEG_SLOPE * act)
            y = jnp.where(in_signal, y, 0.0)
            # im2col: K dilation-shifted copies stacked along the sublane axis.
            # Lane rolls run on the XLU; wrap-around only pollutes lanes inside
            # the halo's invalid margin, which is never stored.
            cols = []
            for k in range(K):
                off = k * d - pad
                if off == 0:
                    cols.append(y)
                else:
                    cols.append(pltpu.roll(y, shift=(-off) % W_in, axis=1))
            ymat = jnp.concatenate(cols, axis=0).astype(jnp.bfloat16)  # (K*C, W_in)
            # One MXU matmul per conv: (C, K*C) @ (K*C, W_in), f32 accumulation.
            act = jnp.dot(w_ref[conv_idx], ymat,
                          preferred_element_type=jnp.float32) + b_ref[conv_idx]
            conv_idx += 1
        xr = act + xr                                          # residual add (VMEM)

    # Lane-dense store of the valid center window.
    o_ref[0] = xr[:, HALO:HALO + T_tile].astype(o_ref.dtype)


# ------------------------- parameter setup (glue) ---------------------------
def weight_norm_weight(v, g):
    """weight_norm(dim=0): W = g * V / ||V||, norm over (in_ch, K) per out_ch."""
    norm = jnp.sqrt(jnp.sum(v * v, axis=(1, 2), keepdims=True))
    return g * v / norm


def init_residual_block_params(key, channels, kernel_size, dilation_config):
    params = []
    for dilations in dilation_config:
        cb = []
        for _ in dilations:
            key, k1, k2, k3 = jax.random.split(key, 4)
            v = 0.1 * jax.random.normal(k1, (channels, channels, kernel_size), jnp.float32)
            g = 0.5 + jax.random.uniform(k2, (channels, 1, 1), jnp.float32)
            b = 0.1 * jax.random.normal(k3, (channels,), jnp.float32)
            cb.append((v, g, b))
        params.append(cb)
    return params


def prepare_params(params, dilation_config, kernel_size):
    """weight_norm + im2col reshape + bf16 cast, done ONCE (not per forward)."""
    C = params[0][0][0].shape[0]
    ws, bs = [], []
    for cb_params, dils in zip(params, dilation_config):
        for (v, g, b), _ in zip(cb_params, dils):
            w = weight_norm_weight(v, g)                       # (C_out, C_in, K)
            w_i = jnp.transpose(w, (0, 2, 1)).reshape(C, kernel_size * C)  # k-major
            ws.append(w_i)
            bs.append(b.reshape(C, 1))
    w_all = jnp.stack(ws, 0).astype(jnp.bfloat16)              # (n_conv, C, K*C)
    b_all = jnp.stack(bs, 0).astype(jnp.float32)               # (n_conv, C, 1)
    return w_all, b_all


# ------------------------- forward wrapper ----------------------------------
@functools.partial(jax.jit, static_argnames=("dilation_config", "kernel_size", "t_tile"))
def residual_block_forward(x_ncl, w_all, b_all, *, dilation_config, kernel_size,
                           t_tile=512):
    """Fused Pallas forward. x_ncl: (N, C, L) like PyTorch; returns (N, C, L)."""
    N, C, L = x_ncl.shape
    K = kernel_size
    n_conv = w_all.shape[0]
    total_pad = sum(d * (K - 1) // 2 for ds in dilation_config for d in ds)
    assert total_pad <= HALO, "dilation config needs a larger HALO"

    T_tile = min(t_tile, _round_up(L, 128))          # lane-aligned time tile
    L_pad = _round_up(L, T_tile)
    num_tiles = L_pad // T_tile
    W_in = T_tile + 2 * HALO

    # Overlapping (haloed) input tiles built once by XLA: (N, num_tiles, C, W_in).
    x_p = jnp.pad(x_ncl, ((0, 0), (0, 0), (HALO, HALO + L_pad - L)))
    x_tiles = jnp.stack(
        [jax.lax.slice_in_dim(x_p, t * T_tile, t * T_tile + W_in, axis=2)
         for t in range(num_tiles)], axis=1)

    kern = functools.partial(
        _residual_block_kernel, C=C, K=K, W_in=W_in, T_tile=T_tile, L=L,
        group_dilations=dilation_config)

    out = pl.pallas_call(
        kern,
        out_shape=jax.ShapeDtypeStruct((N, C, L_pad), x_ncl.dtype),
        grid=(N, num_tiles),
        in_specs=[
            pl.BlockSpec((1, 1, C, W_in), lambda n, t: (n, t, 0, 0)),   # haloed tile
            pl.BlockSpec((n_conv, C, K * C), lambda n, t: (0, 0, 0)),   # weights
            pl.BlockSpec((n_conv, C, 1), lambda n, t: (0, 0, 0)),       # biases
        ],
        out_specs=pl.BlockSpec((1, C, T_tile), lambda n, t: (n, 0, t)),
        compiler_params=pltpu.CompilerParams(
            dimension_semantics=("parallel", "parallel"),
            vmem_limit_bytes=48 * 1024 * 1024),
    )(x_tiles, w_all, b_all)

    return out[:, :, :L]


# ------------------------- pure-JAX reference --------------------------------
def residual_block_reference(x_ncl, params, dilation_config, kernel_size):
    """Reference mirroring the kernel's bf16-operand / f32-accumulate matmul
    policy (otherwise identical to the PyTorch module semantics)."""
    x = x_ncl
    K = kernel_size
    for cb_params, dils in zip(params, dilation_config):
        t = x
        for (v, g, b), d in zip(cb_params, dils):
            w = weight_norm_weight(v, g).astype(jnp.bfloat16)  # (O, I, K)
            pad = d * (K - 1) // 2
            y = jnp.where(t >= 0, t, NEG_SLOPE * t).astype(jnp.bfloat16)
            t = jax.lax.conv_general_dilated(
                y, w, window_strides=(1,), padding=[(pad, pad)],
                rhs_dilation=(d,), dimension_numbers=("NCH", "OIH", "NCH"),
                preferred_element_type=jnp.float32) + b[None, :, None]
        x = t + x
    return x


# ------------------------- main ----------------------------------------------
if __name__ == "__main__":
    # Small shapes consistent with the module.
    N, C, L = 2, 16, 64
    kernel_size = 3
    dilation_config = ((1, 3), (5,))   # tuple-of-tuples: static / hashable

    key = jax.random.PRNGKey(0)
    key, kx, kp = jax.random.split(key, 3)
    x = jax.random.normal(kx, (N, C, L), jnp.float32)          # NCL, like PyTorch
    params = init_residual_block_params(kp, C, kernel_size, dilation_config)

    w_all, b_all = prepare_params(params, dilation_config, kernel_size)

    out = residual_block_forward(x, w_all, b_all,
                                 dilation_config=dilation_config,
                                 kernel_size=kernel_size)
    out = jax.block_until_ready(out)

    ref = jax.block_until_ready(
        residual_block_reference(x, params, dilation_config, kernel_size))

    assert out.shape == (N, C, L)
    assert jnp.allclose(out, ref, atol=1e-2, rtol=1e-2), "mismatch vs reference"

    print("KERNEL_OK")
</pallas_src>

<mosaic_0001>
module attributes {stable_mosaic.version = 11 : i64} {
  func.func @_residual_block_kernel(%arg0: i32, %arg1: i32, %arg2: memref<1x1x16x384xf32, #tpu.memory_space<vmem>>, %arg3: memref<3x16x48xbf16, #tpu.memory_space<vmem>>, %arg4: memref<3x16x1xf32, #tpu.memory_space<vmem>>, %arg5: memref<1x16x128xf32, #tpu.memory_space<vmem>>) attributes {dimension_semantics = [#tpu.dimension_semantics<parallel>, #tpu.dimension_semantics<parallel>], iteration_bounds = array<i64: 2, 1>, scalar_prefetch = 0 : i64, scratch_operands = 0 : i64, tpu.core_type = #tpu.core_type<tc>, window_params = [{transform_indices = @transform_0, window_bounds = array<i64: 1, 1, 16, 384>}, {pipeline_mode = #tpu.pipeline_mode<synchronous>, transform_indices = @transform_1, window_bounds = array<i64: 3, 16, 48>}, {pipeline_mode = #tpu.pipeline_mode<synchronous>, transform_indices = @transform_2, window_bounds = array<i64: 3, 16, 1>}, {transform_indices = @transform_3, window_bounds = array<i64: 1, 16, 128>}]} {
    %c0 = arith.constant 0 : index
    %c0_0 = arith.constant 0 : index
    %c0_1 = arith.constant 0 : index
    %c0_2 = arith.constant 0 : index
    %0 = vector.load %arg2[%c0, %c0_0, %c0_1, %c0_2] : memref<1x1x16x384xf32, #tpu.memory_space<vmem>>, vector<1x1x16x384xf32>
    %1 = vector.shape_cast %0 : vector<1x1x16x384xf32> to vector<16x384xf32>
    %2 = tpu.iota {dimensions = array<i32: 1>} : vector<16x384xi32>
    %c128_i32 = arith.constant 128 : i32
    %3 = arith.muli %arg1, %c128_i32 : i32
    %c128_i32_3 = arith.constant 128 : i32
    %4 = arith.subi %3, %c128_i32_3 : i32
    %5 = vector.broadcast %4 : i32 to vector<16x384xi32>
    %6 = arith.addi %2, %5 : vector<16x384xi32>
    %c0_i32 = arith.constant 0 : i32
    %7 = vector.broadcast %c0_i32 : i32 to vector<16x384xi32>
    %8 = arith.cmpi sge, %6, %7 : vector<16x384xi32>
    %c64_i32 = arith.constant 64 : i32
    %9 = vector.broadcast %c64_i32 : i32 to vector<16x384xi32>
    %10 = arith.cmpi slt, %6, %9 : vector<16x384xi32>
    %11 = arith.andi %8, %10 : vector<16x384xi1>
    %cst = arith.constant 0.000000e+00 : f32
    %12 = vector.broadcast %cst : f32 to vector<16x384xf32>
    %13 = arith.cmpf oge, %1, %12 : vector<16x384xf32>
    %cst_4 = arith.constant 0.00999999977 : f32
    %14 = vector.broadcast %cst_4 : f32 to vector<16x384xf32>
    %15 = arith.mulf %14, %1 : vector<16x384xf32>
    %16 = arith.select %13, %1, %15 : vector<16x384xi1>, vector<16x384xf32>
    %cst_5 = arith.constant 0.000000e+00 : f32
    %17 = vector.broadcast %cst_5 : f32 to vector<16x384xf32>
    %18 = arith.select %11, %16, %17 : vector<16x384xi1>, vector<16x384xf32>
    %c1_i32 = arith.constant 1 : i32
    %19 = tpu.dynamic_rotate %18 by %c1_i32 dim 1 : vector<16x384xf32>, i32 -> vector<16x384xf32>
    %c383_i32 = arith.constant 383 : i32
    %20 = tpu.dynamic_rotate %18 by %c383_i32 dim 1 : vector<16x384xf32>, i32 -> vector<16x384xf32>
    %21 = tpu.concatenate %19, %18, %20 in 0 : vector<16x384xf32>, vector<16x384xf32>, vector<16x384xf32> -> vector<48x384xf32>
    %22 = arith.truncf %21 : vector<48x384xf32> to vector<48x384xbf16>
    %c0_6 = arith.constant 0 : index
    %c0_7 = arith.constant 0 : index
    %c0_8 = arith.constant 0 : index
    %23 = vector.load %arg3[%c0_6, %c0_7, %c0_8] : memref<3x16x48xbf16, #tpu.memory_space<vmem>>, vector<1x16x48xbf16>
    %24 = vector.shape_cast %23 : vector<1x16x48xbf16> to vector<16x48xbf16>
    %cst_9 = arith.constant dense<0.000000e+00> : vector<16x384xf32>
    %25 = tpu.matmul %24, %22, %cst_9 {dimension_numbers = #tpu.dot_dimension_numbers<[1], [0], [0], [1], [0, 0, 1, 1], [], []>} : vector<16x48xbf16>, vector<48x384xbf16>, vector<16x384xf32> -> vector<16x384xf32>
    %c0_10 = arith.constant 0 : index
    %c0_11 = arith.constant 0 : index
    %c0_12 = arith.constant 0 : index
    %26 = vector.load %arg4[%c0_10, %c0_11, %c0_12] : memref<3x16x1xf32, #tpu.memory_space<vmem>>, vector<1x16x1xf32>
    %27 = vector.shape_cast %26 : vector<1x16x1xf32> to vector<16x1xf32>
    %28 = vector.broadcast %27 : vector<16x1xf32> to vector<16x384xf32>
    %29 = arith.addf %25, %28 : vector<16x384xf32>
    %cst_13 = arith.constant 0.000000e+00 : f32
    %30 = vector.broadcast %cst_13 : f32 to vector<16x384xf32>
    %31 = arith.cmpf oge, %29, %30 : vector<16x384xf32>
    %cst_14 = arith.constant 0.00999999977 : f32
    %32 = vector.broadcast %cst_14 : f32 to vector<16x384xf32>
    %33 = arith.mulf %32, %29 : vector<16x384xf32>
    %34 = arith.select %31, %29, %33 : vector<16x384xi1>, vector<16x384xf32>
    %cst_15 = arith.constant 0.000000e+00 : f32
    %35 = vector.broadcast %cst_15 : f32 to vector<16x384xf32>
    %36 = arith.select %11, %34, %35 : vector<16x384xi1>, vector<16x384xf32>
    %c3_i32 = arith.constant 3 : i32
    %37 = tpu.dynamic_rotate %36 by %c3_i32 dim 1 : vector<16x384xf32>, i32 -> vector<16x384xf32>
    %c381_i32 = arith.constant 381 : i32
    %38 = tpu.dynamic_rotate %36 by %c381_i32 dim 1 : vector<16x384xf32>, i32 -> vector<16x384xf32>
    %39 = tpu.concatenate %37, %36, %38 in 0 : vector<16x384xf32>, vector<16x384xf32>, vector<16x384xf32> -> vector<48x384xf32>
    %40 = arith.truncf %39 : vector<48x384xf32> to vector<48x384xbf16>
    %c1 = arith.constant 1 : index
    %c0_16 = arith.constant 0 : index
    %c0_17 = arith.constant 0 : index
    %41 = vector.load %arg3[%c1, %c0_16, %c0_17] : memref<3x16x48xbf16, #tpu.memory_space<vmem>>, vector<1x16x48xbf16>
    %42 = vector.shape_cast %41 : vector<1x16x48xbf16> to vector<16x48xbf16>
    %cst_18 = arith.constant dense<0.000000e+00> : vector<16x384xf32>
    %43 = tpu.matmul %42, %40, %cst_18 {dimension_numbers = #tpu.dot_dimension_numbers<[1], [0], [0], [1], [0, 0, 1, 1], [], []>} : vector<16x48xbf16>, vector<48x384xbf16>, vector<16x384xf32> -> vector<16x384xf32>
    %c1_19 = arith.constant 1 : index
    %c0_20 = arith.constant 0 : index
    %c0_21 = arith.constant 0 : index
    %44 = vector.load %arg4[%c1_19, %c0_20, %c0_21] : memref<3x16x1xf32, #tpu.memory_space<vmem>>, vector<1x16x1xf32>
    %45 = vector.shape_cast %44 : vector<1x16x1xf32> to vector<16x1xf32>
    %46 = vector.broadcast %45 : vector<16x1xf32> to vector<16x384xf32>
    %47 = arith.addf %43, %46 : vector<16x384xf32>
    %48 = arith.addf %47, %1 : vector<16x384xf32>
    %cst_22 = arith.constant 0.000000e+00 : f32
    %49 = vector.broadcast %cst_22 : f32 to vector<16x384xf32>
    %50 = arith.cmpf oge, %48, %49 : vector<16x384xf32>
    %cst_23 = arith.constant 0.00999999977 : f32
    %51 = vector.broadcast %cst_23 : f32 to vector<16x384xf32>
    %52 = arith.mulf %51, %48 : vector<16x384xf32>
    %53 = arith.select %50, %48, %52 : vector<16x384xi1>, vector<16x384xf32>
    %cst_24 = arith.constant 0.000000e+00 : f32
    %54 = vector.broadcast %cst_24 : f32 to vector<16x384xf32>
    %55 = arith.select %11, %53, %54 : vector<16x384xi1>, vector<16x384xf32>
    %c5_i32 = arith.constant 5 : i32
    %56 = tpu.dynamic_rotate %55 by %c5_i32 dim 1 : vector<16x384xf32>, i32 -> vector<16x384xf32>
    %c379_i32 = arith.constant 379 : i32
    %57 = tpu.dynamic_rotate %55 by %c379_i32 dim 1 : vector<16x384xf32>, i32 -> vector<16x384xf32>
    %58 = tpu.concatenate %56, %55, %57 in 0 : vector<16x384xf32>, vector<16x384xf32>, vector<16x384xf32> -> vector<48x384xf32>
    %59 = arith.truncf %58 : vector<48x384xf32> to vector<48x384xbf16>
    %c2 = arith.constant 2 : index
    %c0_25 = arith.constant 0 : index
    %c0_26 = arith.constant 0 : index
    %60 = vector.load %arg3[%c2, %c0_25, %c0_26] : memref<3x16x48xbf16, #tpu.memory_space<vmem>>, vector<1x16x48xbf16>
    %61 = vector.shape_cast %60 : vector<1x16x48xbf16> to vector<16x48xbf16>
    %cst_27 = arith.constant dense<0.000000e+00> : vector<16x384xf32>
    %62 = tpu.matmul %61, %59, %cst_27 {dimension_numbers = #tpu.dot_dimension_numbers<[1], [0], [0], [1], [0, 0, 1, 1], [], []>} : vector<16x48xbf16>, vector<48x384xbf16>, vector<16x384xf32> -> vector<16x384xf32>
    %c2_28 = arith.constant 2 : index
    %c0_29 = arith.constant 0 : index
    %c0_30 = arith.constant 0 : index
    %63 = vector.load %arg4[%c2_28, %c0_29, %c0_30] : memref<3x16x1xf32, #tpu.memory_space<vmem>>, vector<1x16x1xf32>
    %64 = vector.shape_cast %63 : vector<1x16x1xf32> to vector<16x1xf32>
    %65 = vector.broadcast %64 : vector<16x1xf32> to vector<16x384xf32>
    %66 = arith.addf %62, %65 : vector<16x384xf32>
    %67 = arith.addf %66, %48 : vector<16x384xf32>
    %68 = vector.extract_strided_slice %67 {offsets = [0, 128], sizes = [16, 128], strides = [1, 1]} : vector<16x384xf32> to vector<16x128xf32>
    %c0_31 = arith.constant 0 : index
    %c0_32 = arith.constant 0 : index
    %c0_33 = arith.constant 0 : index
    %69 = vector.load %arg5[%c0_31, %c0_32, %c0_33] : memref<1x16x128xf32, #tpu.memory_space<vmem>>, vector<1x16x128xf32>
    %70 = vector.shape_cast %69 : vector<1x16x128xf32> to vector<16x128xf32>
    %71 = vector.shape_cast %68 : vector<16x128xf32> to vector<1x16x128xf32>
    tpu.vector_store %arg5[%c0_31, %c0_32, %c0_33], %71 {strides = array<i32>} : memref<1x16x128xf32, #tpu.memory_space<vmem>>, vector<1x16x128xf32>,
    return
  }
  func.func @transform_0(%arg0: i32, %arg1: i32) -> (i32, i32, i32, i32) {
    %c0_i32 = arith.constant 0 : i32
    %c0_i32_0 = arith.constant 0 : i32
    %c0_i32_1 = arith.constant 0 : i32
    return %arg0, %arg1, %c0_i32, %c0_i32_0 : i32, i32, i32, i32
  }
  func.func @transform_1(%arg0: i32, %arg1: i32) -> (i32, i32, i32) {
    %c0_i32 = arith.constant 0 : i32
    %c0_i32_0 = arith.constant 0 : i32
    %c0_i32_1 = arith.constant 0 : i32
    %c0_i32_2 = arith.constant 0 : i32
    return %c0_i32, %c0_i32_0, %c0_i32_1 : i32, i32, i32
  }
  func.func @transform_2(%arg0: i32, %arg1: i32) -> (i32, i32, i32) {
    %c0_i32 = arith.constant 0 : i32
    %c0_i32_0 = arith.constant 0 : i32
    %c0_i32_1 = arith.constant 0 : i32
    %c0_i32_2 = arith.constant 0 : i32
    return %c0_i32, %c0_i32_0, %c0_i32_1 : i32, i32, i32
  }
  func.func @transform_3(%arg0: i32, %arg1: i32) -> (i32, i32, i32) {
    %c0_i32 = arith.constant 0 : i32
    %c0_i32_0 = arith.constant 0 : i32
    return %arg0, %c0_i32, %arg1 : i32, i32, i32
  }
}

</mosaic_0001>

<llo_original>
// kernel: residual_block_forward.1
$region0: #{residual_block_forward.1}
  #allocation0 [shape = 'u32[]', space=smem, size = 0x4, offset = 0x4, fixed_abs, tag = 'smem constant byte address 0x4 - core index']
  #allocation1 [shape = 'u32[144,128]{1,0:T(1,128)}', space=vmem, size = 0x12000, scoped, tag = 'internal scratch']
  %s0 = inlined_call_operand.vmem [shape: f32[2,1,16,384], index: 0, kind: input, shape index: {}]
  %s1 = inlined_call_operand.vmem [shape: bf16[3,16,48], index: 1, kind: input, shape index: {}]
  %s2 = inlined_call_operand.vmem [shape: f32[3,16,1], index: 2, kind: input, shape index: {}]
  %s3 = inlined_call_operand.hbm [shape: f32[2,16,128], index: 3, kind: output, shape index: {}]
  %s4 = sld [smem:[#allocation0]]
  $region45: #{residual_block_forward.1} parent=0
    _
  %s6 = ssub.s32 1, %s4
  %s7 = scalar_select 0, %s6, %s4
  $region1: #{residual_block_forward.1} parent=0
    #allocation2 [shape = 'u8[16384]{0}', space=vmem, size = 0x4000, scoped, tag = 'output window, operand 0']
    #allocation3 [shape = 's32[2]{0}', space=sflag, size = 0x8, scoped, tag = 'scoped memory for residual_block_forward.1']
    %8 = vsyncpa [#allocation3], 0
    %s9 = scalar_lea.sflag [#allocation3], 1
    %10 = vsyncpa %s9, 0
    loop: start=0, step=1, limit=4
    $region2: #{residual_block_forward.1} parent=1 // loop_pre_header
      _
    $region3: #{residual_block_forward.1} parent=1 // loop_header
      %s12 = sphi 0, %s16
      %p13 = scmp.ge.s32.totalorder %s12, 4
      %s19 = sphi 0, %s31
      %s20 = sphi 0, %s27
      %s21 = sphi 0, %s19
      %s22 = sphi 0, %s20
      %s23 = sphi 0, %s21
      %s24 = sphi 0, %s22
      %s36 = sphi 0, %s38
      %s39 = sphi 0, %s36
      %s40 = sphi 0, %s39
      %s56 = sphi 0, %s40
      %s60 = sphi 0, %s60
      %s62 = sphi 0, %s60
      %s63 = sphi 0, %s62
      %s77 = sphi 0, %s63
      %s81 = sphi 0, %s81
      %s83 = sphi 0, %s81
      %s84 = sphi 0, %s83
      %s98 = sphi 0, %s84
      %s106 = sphi 0, %s108
      %s109 = sphi 0, %s106
      %s110 = sphi 0, %s109
      %s126 = sphi 0, %s110
    $region4: #{residual_block_forward.1} parent=1 // loop_header_branch
      %15 = sbr.rel (%p13) target = $region8
    $region5: #{residual_block_forward.1} parent=1 // loop_body
      %s17 = ssub.s32 %s12, 1
      %s18 = ssub.s32 %s12, 2
      %s25 = sadd.s32 1, %s20
      %p26 = scmp.ge.s32.totalorder %s25, 1
      %s27 = scalar_select %p26, 0, %s25
      %s28 = sadd.s32 1, %s19
      %s29 = scalar_select %p26, %s28, %s19
      %p30 = scmp.ge.s32.totalorder %s29, 2
      %s31 = scalar_select %p30, 0, %s29
      %s32 = ssub.s32 %s19, %s31
      %s33 = ssub.s32 %s20, %s27
      %s34 = sor.u32 %s32, %s33
      %p35 = scmp.eq.s32.totalorder %s34, 0
      %s37 = sadd.s32 %s36, 1
      %s38 = scalar_select %p35, %s36, %s37
      %p41 = pneg %p35
      %p42 = scmp.eq.s32.totalorder %s12, 1
      %p43 = por %p41, %p42
      %p44 = scmp.ne.s32.totalorder %s36, %s39
      %p45 = scmp.eq.s32.totalorder %s12, 0
      %p46 = por %p44, %p45
      %p47 = scmp.ne.s32.totalorder %s36, %s39
      %p48 = scmp.eq.s32.totalorder %s17, 1
      %p49 = por %p47, %p48
      %p50 = scmp.ne.s32.totalorder %s39, %s40
      %p51 = scmp.eq.s32.totalorder %s17, 0
      %p52 = por %p50, %p51
      %p53 = scmp.ne.s32.totalorder %s39, %s40
      %p54 = scmp.eq.s32.totalorder %s18, 1
      %p55 = por %p53, %p54
      %p57 = scmp.ne.s32.totalorder %s40, %s56
      %p58 = scmp.eq.s32.totalorder %s18, 0
      %p59 = por %p57, %p58
      %s61 = sadd.s32 %s60, 1
      %p64 = scmp.eq.s32.totalorder %s12, 1
      %p65 = scmp.ne.s32.totalorder %s60, %s62
      %p66 = scmp.eq.s32.totalorder %s12, 0
      %p67 = por %p65, %p66
      %p68 = scmp.ne.s32.totalorder %s60, %s62
      %p69 = scmp.eq.s32.totalorder %s17, 1
      %p70 = por %p68, %p69
      %p71 = scmp.ne.s32.totalorder %s62, %s63
      %p72 = scmp.eq.s32.totalorder %s17, 0
      %p73 = por %p71, %p72
      %p74 = scmp.ne.s32.totalorder %s62, %s63
      %p75 = scmp.eq.s32.totalorder %s18, 1
      %p76 = por %p74, %p75
      %p78 = scmp.ne.s32.totalorder %s63, %s77
      %p79 = scmp.eq.s32.totalorder %s18, 0
      %p80 = por %p78, %p79
      %s82 = sadd.s32 %s81, 1
      %p85 = scmp.eq.s32.totalorder %s12, 1
      %p86 = scmp.ne.s32.totalorder %s81, %s83
      %p87 = scmp.eq.s32.totalorder %s12, 0
      %p88 = por %p86, %p87
      %p89 = scmp.ne.s32.totalorder %s81, %s83
      %p90 = scmp.eq.s32.totalorder %s17, 1
      %p91 = por %p89, %p90
      %p92 = scmp.ne.s32.totalorder %s83, %s84
      %p93 = scmp.eq.s32.totalorder %s17, 0
      %p94 = por %p92, %p93
      %p95 = scmp.ne.s32.totalorder %s83, %s84
      %p96 = scmp.eq.s32.totalorder %s18, 1
      %p97 = por %p95, %p96
      %p99 = scmp.ne.s32.totalorder %s84, %s98
      %p100 = scmp.eq.s32.totalorder %s18, 0
      %p101 = por %p99, %p100
      %s102 = ssub.s32 %s19, %s31
      %s103 = ssub.s32 %s20, %s27
      %s104 = sor.u32 %s102, %s103
      %p105 = scmp.eq.s32.totalorder %s104, 0
      %s107 = sadd.s32 %s106, 1
      %s108 = scalar_select %p105, %s106, %s107
      %p111 = pneg %p105
      %p112 = scmp.eq.s32.totalorder %s12, 1
      %p113 = por %p111, %p112
      %p114 = scmp.ne.s32.totalorder %s106, %s109
      %p115 = scmp.eq.s32.totalorder %s12, 0
      %p116 = por %p114, %p115
      %p117 = scmp.ne.s32.totalorder %s106, %s109
      %p118 = scmp.eq.s32.totalorder %s17, 1
      %p119 = por %p117, %p118
      %p120 = scmp.ne.s32.totalorder %s109, %s110
      %p121 = scmp.eq.s32.totalorder %s17, 0
      %p122 = por %p120, %p121
      %p123 = scmp.ne.s32.totalorder %s109, %s110
      %p124 = scmp.eq.s32.totalorder %s18, 1
      %p125 = por %p123, %p124
      %p127 = scmp.ne.s32.totalorder %s110, %s126
      %p128 = scmp.eq.s32.totalorder %s18, 0
      %p129 = por %p127, %p128
      %p130 = scmp.le.s32.totalorder 1, %s12
      %p131 = scmp.lt.s32.totalorder %s12, 3
      %p132 = pnand %p130, %p131
      %p133 = pneg %p132
      // Predicated region
      $region9: #{residual_block_forward.1} parent=5 // pred_check
        _
      $region10: #{residual_block_forward.1} parent=5 // pred_check_branch
        %135 = sbr.rel (%p132) target = $region12
      $region11: #{residual_block_forward.1} parent=5 // pred_region
        %s136 = ssub.s32 %s12, 1
        // Predicated region
        $region13: #{residual_block_forward.1} parent=11 // pred_check
          %p137 = pneg %p73
        $region14: #{residual_block_forward.1} parent=11 // pred_check_branch
          %139 = sbr.rel (%p137) target = $region16
        $region15: #{residual_block_forward.1} parent=11 // pred_region
          _
        $region16: #{residual_block_forward.1} parent=11 // pred_fallthru
          _
        // Predicated region
        $region17: #{residual_block_forward.1} parent=11 // pred_check
          %p140 = pneg %p94
        $region18: #{residual_block_forward.1} parent=11 // pred_check_branch
          %142 = sbr.rel (%p140) target = $region20
        $region19: #{residual_block_forward.1} parent=11 // pred_region
          _
        $region20: #{residual_block_forward.1} parent=11 // pred_fallthru
          _
      $region12: #{residual_block_forward.1} parent=5 // pred_fallthru
        _
      %p143 = scmp.lt.s32.totalorder %s12, 2
      // Predicated region
      $region21: #{residual_block_forward.1} parent=5 // pred_check
        %p144 = pneg %p143
      $region22: #{residual_block_forward.1} parent=5 // pred_check_branch
        %146 = sbr.rel (%p144) target = $region24
      $region23: #{residual_block_forward.1} parent=5 // pred_region
        // Predicated region
        $region25: #{residual_block_forward.1} parent=23 // pred_check
          %p147 = pneg %p46
        $region26: #{residual_block_forward.1} parent=23 // pred_check_branch
          %149 = sbr.rel (%p147) target = $region28
        $region27: #{residual_block_forward.1} parent=23 // pred_region
          %p150 = scmp.lt.s32.totalorder %s19, 1
          %s151 = scalar_select %p150, %s19, 1
          %p152 = scmp.lt.s32.totalorder %s20, 0
          %s153 = scalar_select %p152, %s20, 0
          %s154 = smul.addr %s153, 6
          %s155 = smul.addr %s151, 6
          %s156 = sadd.s32 %s154, %s155
          %s157 = smul.addr %s156, 8
          %s158 = scalar_lea.vmem %s0, %s157
        $region28: #{residual_block_forward.1} parent=23 // pred_fallthru
          _
      $region24: #{residual_block_forward.1} parent=5 // pred_fallthru
        _
      %p159 = scmp.le.s32.totalorder 1, %s12
      %p160 = scmp.lt.s32.totalorder %s12, 3
      %p161 = pnand %p159, %p160
      %p162 = pneg %p161
      // Predicated region
      $region29: #{residual_block_forward.1} parent=5 // pred_check
        _
      $region30: #{residual_block_forward.1} parent=5 // pred_check_branch
        %164 = sbr.rel (%p161) target = $region32
      $region31: #{residual_block_forward.1} parent=5 // pred_region
        %s165 = ssub.s32 %s12, 1
        %p166 = scmp.lt.s32.totalorder %s21, 1
        %s167 = scalar_select %p166, %s21, 1
        %p168 = scmp.lt.s32.totalorder %s22, 0
        %s169 = scalar_select %p168, %s22, 0
        %s170 = smul.addr %s169, 6
        %s171 = smul.addr %s167, 6
        %s172 = sadd.s32 %s170, %s171
        %s173 = smul.addr %s172, 8
        %s174 = scalar_lea.vmem %s0, %s173
        %p175 = pneg %p52
        %p176 = pneg %p49
        %p177 = pneg %p73
        %p178 = pneg %p70
        %p179 = pneg %p94
        %p180 = pneg %p91
        %p181 = pneg %p122
        %p182 = pneg %p119
        %s183 = sand.u32 %s109, 1
        %s184 = scalar_lea.sflag [#allocation3], %s183
        %s185 = sand.u32 %s109, 1
        %s186 = smul.addr %s185, 16
        %s187 = scalar_lea.vmem [#allocation2], %s186
        %p188 = scmp.lt.s32.totalorder %s21, 1
        %s189 = scalar_select %p188, %s21, 1
        %p190 = scmp.lt.s32.totalorder %s22, 0
        %s191 = scalar_select %p190, %s22, 0
        %s192 = smul.addr %s191, 6
        %s193 = smul.addr %s189, 6
        %s194 = sadd.s32 %s192, %s193
        %s195 = smul.addr %s194, 8
        %s196 = scalar_lea.vmem %s0, %s195
        %v198 = vld [vmem:[%s196] sm:$0xff]
        %v199 = vld [vmem:[%s196 + $0x8] sm:$0xff]
        %v200 = vld [vmem:[%s196 + $0x10] sm:$0xff]
        %v201 = vld [vmem:[%s196 + $0x18] sm:$0xff]
        %v202 = vld [vmem:[%s196 + $0x20] sm:$0xff]
        %v203 = vld [vmem:[%s196 + $0x28] sm:$0xff]
        %v204 = vlaneseq
        %v205 = vand.u32 %v204, 127
        %v206 = vadd.s32 %v205, 128
        %v207 = vadd.s32 %v205, 256
        %s208 = smul.u32 %s22, 128
        %s209 = ssub.s32 %s208, 128
        %v210 = vstv %s209
        %v211 = vadd.s32 %v205, %v210
        %v212 = vadd.s32 %v206, %v210
        %v213 = vadd.s32 %v207, %v210
        %vm214 = vcmp.ge.s32.totalorder %v211, 0
        %vm215 = vcmp.ge.s32.totalorder %v212, 0
        %vm216 = vcmp.ge.s32.totalorder %v213, 0
        %vm217 = vcmp.lt.s32.totalorder %v211, 64
        %vm218 = vcmp.lt.s32.totalorder %v212, 64
        %vm219 = vcmp.lt.s32.totalorder %v213, 64
        %vm220 = vmand %vm214, %vm217
        %vm221 = vmand %vm215, %vm218
        %vm222 = vmand %vm216, %vm219
        %vm223 = vcmp.ge.f32.partialorder %v198, 0.0
        %vm224 = vcmp.ge.f32.partialorder %v199, 0.0
        %vm225 = vcmp.ge.f32.partialorder %v200, 0.0
        %vm226 = vcmp.ge.f32.partialorder %v201, 0.0
        %vm227 = vcmp.ge.f32.partialorder %v202, 0.0
        %vm228 = vcmp.ge.f32.partialorder %v203, 0.0
        %v229 = vmul.f32 %v198, 0.01
        %v230 = vmul.f32 %v199, 0.01
        %v231 = vmul.f32 %v200, 0.01
        %v232 = vmul.f32 %v201, 0.01
        %v233 = vmul.f32 %v202, 0.01
        %v234 = vmul.f32 %v203, 0.01
        %v235 = vsel %vm223, %v198, %v229
        %v236 = vsel %vm224, %v199, %v230
        %v237 = vsel %vm225, %v200, %v231
        %v238 = vsel %vm226, %v201, %v232
        %v239 = vsel %vm227, %v202, %v233
        %v240 = vsel %vm228, %v203, %v234
        %v241 = vsel %vm220, %v235, 0.0
        %v242 = vsel %vm221, %v236, 0.0
        %v243 = vsel %vm222, %v237, 0.0
        %v244 = vsel %vm220, %v238, 0.0
        %v245 = vsel %vm221, %v239, 0.0
        %v246 = vsel %vm222, %v240, 0.0
        %247 = vrot.lane.b32.xlu0 %v241, 1
        %v248 = vpop.permute.xlu0 %247
        %249 = vrot.lane.b32.xlu0 %v244, 1
        %v250 = vpop.permute.xlu0 %249
        %251 = vrot.lane.b32.xlu0 %v242, 1
        %v252 = vpop.permute.xlu0 %251
        %253 = vrot.lane.b32.xlu0 %v245, 1
        %v254 = vpop.permute.xlu0 %253
        %255 = vrot.lane.b32.xlu0 %v243, 1
        %v256 = vpop.permute.xlu0 %255
        %257 = vrot.lane.b32.xlu0 %v246, 1
        %v258 = vpop.permute.xlu0 %257
        %vm259 = vcmp.lt.s32.totalorder %v205, 1
        %v260 = vsel %vm259, %v252, %v256
        %v261 = vsel %vm259, %v254, %v258
        %v262 = vsel %vm259, %v248, %v252
        %v263 = vsel %vm259, %v250, %v254
        %v264 = vsel %vm259, %v256, %v248
        %v265 = vsel %vm259, %v258, %v250
        %266 = vrot.lane.b32.xlu0 %v241, 127
        %v267 = vpop.permute.xlu0 %266
        %268 = vrot.lane.b32.xlu0 %v244, 127
        %v269 = vpop.permute.xlu0 %268
        %270 = vrot.lane.b32.xlu0 %v242, 127
        %v271 = vpop.permute.xlu0 %270
        %272 = vrot.lane.b32.xlu0 %v245, 127
        %v273 = vpop.permute.xlu0 %272
        %274 = vrot.lane.b32.xlu0 %v243, 127
        %v275 = vpop.permute.xlu0 %274
        %276 = vrot.lane.b32.xlu0 %v246, 127
        %v277 = vpop.permute.xlu0 %276
        %vm278 = vcmp.lt.s32.totalorder %v205, 127
        %v279 = vsel %vm278, %v271, %v275
        %v280 = vsel %vm278, %v273, %v277
        %v281 = vsel %vm278, %v267, %v271
        %v282 = vsel %vm278, %v269, %v273
        %v283 = vsel %vm278, %v275, %v267
        %v284 = vsel %vm278, %v277, %v269
        %v285 = vpack.c.bf16 %v265, %v264
        %v286 = vpack.c.bf16 %v263, %v262
        %v287 = vpack.c.bf16 %v261, %v260
        %v288 = vpack.c.bf16 %v244, %v241
        %v289 = vpack.c.bf16 %v245, %v242
        %v290 = vpack.c.bf16 %v246, %v243
        %v291 = vpack.c.bf16 %v282, %v281
        %v292 = vpack.c.bf16 %v280, %v279
        %v293 = vpack.c.bf16 %v284, %v283
        %v294 = vld [vmem:[%s1] sm:$0xf]
        %v295 = vld [vmem:[%s1 + $0x4] sm:$0xf]
        %v296 = vld [vmem:[%s2] sm:$0xff]
        %v297 = vld [vmem:[%s2 + $0x8] sm:$0xff]
        %299 = vset.pattern.permute.xlu0 0
        %300 = vperm.xlu0 %299, %v296
        %v301 = vpop.permute.xlu0 %300
        %304 = vset.pattern.permute.xlu0 0
        %305 = vperm.xlu0 %304, %v297
        %v306 = vpop.permute.xlu0 %305
        %v310 = vunpack.c.l.b16 %v294
        %v311 = vunpack.c.l.b16 %v295
        %v312 = vpack.c.b16 %v311, %v310
        %vm313 = vcmask 392192
        %v315 = vsel %vm313, %v312, 0
        %317 = vmatprep.subr.bf16.mxu0 0
        %318 = vmatpush1.bf16.msra.mxu0 0
        %319 = vmatprep.subr.bf16.mxu0 0
        %320 = vmatpush1.bf16.msra.mxu0 0
        %321 = vmatprep.subr.bf16.mxu0 0
        %322 = vmatpush1.bf16.msra.mxu0 0
        %323 = vmatprep.subr.bf16.mxu0 0
        %324 = vmatpush1.bf16.msra.mxu0 0
        %325 = vmatprep.subr.bf16.mxu0 0
        %326 = vmatpush1.bf16.msra.mxu0 0
        %327 = vmatprep.subr.bf16.mxu0 %v292
        %328 = vmatpush1.bf16.msra.mxu0 %v291
        %329 = vmatprep.subr.bf16.mxu0 %v289
        %330 = vmatpush1.bf16.msra.mxu0 %v288
        %331 = vmatprep.subr.bf16.mxu0 %v286
        %332 = vmatpush1.bf16.msra.mxu0 %v285
        %333 = vmatprep.subr.bf16.mxu0 0
        %334 = vmatpush2.bf16.msra.mxu0 0
        %335 = vmatprep.subr.bf16.mxu0 0
        %336 = vmatpush2.bf16.msra.mxu0 0
        %337 = vmatprep.subr.bf16.mxu0 0
        %338 = vmatpush2.bf16.msra.mxu0 0
        %339 = vmatprep.subr.bf16.mxu0 0
        %340 = vmatpush2.bf16.msra.mxu0 0
        %341 = vmatprep.subr.bf16.mxu0 0
        %342 = vmatpush2.bf16.msra.mxu0 0
        %343 = vmatprep.subr.bf16.mxu0 0
        %344 = vmatpush2.bf16.msra.mxu0 0
        %345 = vmatprep.subr.bf16.mxu0 0
        %346 = vmatpush2.bf16.msra.mxu0 0
        %347 = vmatprep.subr.bf16.mxu0 0
        %348 = vmatpush2.bf16.msra.mxu0 0
        %349 = vmatprep.mubr.bf16.mxu0 0
        %350 = vmatmul.mubr.bf16.gmra.mxu0 %v315
        %v351 = vpop.f32.mrf.mxu0
        %v352 = vadd.f32 %v301, %v351
        %v353 = vpop.f32.mrf.mxu0
        %v354 = vadd.f32 %v301, %v353
        %v355 = vpop.f32.mrf.mxu0
        %v356 = vadd.f32 %v306, %v355
        %v357 = vpop.f32.mrf.mxu0
        %v358 = vadd.f32 %v306, %v357
        %359 = vdwg.mxu0
        %360 = vmatprep.subr.bf16.mxu0 0
        %361 = vmatpush1.bf16.msra.mxu0 0
        %362 = vmatprep.subr.bf16.mxu0 0
        %363 = vmatpush1.bf16.msra.mxu0 0
        %364 = vmatprep.subr.bf16.mxu0 0
        %365 = vmatpush1.bf16.msra.mxu0 0
        %366 = vmatprep.subr.bf16.mxu0 0
        %367 = vmatpush1.bf16.msra.mxu0 0
        %368 = vmatprep.subr.bf16.mxu0 0
        %369 = vmatpush1.bf16.msra.mxu0 0
        %370 = vmatprep.subr.bf16.mxu0 0
        %371 = vmatpush1.bf16.msra.mxu0 %v293
        %372 = vmatprep.subr.bf16.mxu0 0
        %373 = vmatpush1.bf16.msra.mxu0 %v290
        %374 = vmatprep.subr.bf16.mxu0 0
        %375 = vmatpush1.bf16.msra.mxu0 %v287
        %376 = vmatprep.subr.bf16.mxu0 0
        %377 = vmatpush2.bf16.msra.mxu0 0
        %378 = vmatprep.subr.bf16.mxu0 0
        %379 = vmatpush2.bf16.msra.mxu0 0
        %380 = vmatprep.subr.bf16.mxu0 0
        %381 = vmatpush2.bf16.msra.mxu0 0
        %382 = vmatprep.subr.bf16.mxu0 0
        %383 = vmatpush2.bf16.msra.mxu0 0
        %384 = vmatprep.subr.bf16.mxu0 0
        %385 = vmatpush2.bf16.msra.mxu0 0
        %386 = vmatprep.subr.bf16.mxu0 0
        %387 = vmatpush2.bf16.msra.mxu0 0
        %388 = vmatprep.subr.bf16.mxu0 0
        %389 = vmatpush2.bf16.msra.mxu0 0
        %390 = vmatprep.subr.bf16.mxu0 0
        %391 = vmatpush2.bf16.msra.mxu0 0
        %392 = vmatprep.mubr.bf16.mxu0 0
        %393 = vmatmul.mubr.bf16.gmra.mxu0 %v315
        %v394 = vpop.f32.mrf.mxu0
        %v395 = vadd.f32 %v301, %v394
        %v396 = vpop.f32.mrf.mxu0
        %v397 = vpop.f32.mrf.mxu0
        %v398 = vadd.f32 %v306, %v397
        %v399 = vpop.f32.mrf.mxu0
        %400 = vdwg.mxu0
        %vm401 = vcmp.ge.f32.partialorder %v352, 0.0
        %vm402 = vcmp.ge.f32.partialorder %v354, 0.0
        %vm403 = vcmp.ge.f32.partialorder %v395, 0.0
        %vm404 = vcmp.ge.f32.partialorder %v356, 0.0
        %vm405 = vcmp.ge.f32.partialorder %v358, 0.0
        %vm406 = vcmp.ge.f32.partialorder %v398, 0.0
        %v407 = vmul.f32 %v352, 0.01
        %v408 = vmul.f32 %v354, 0.01
        %v409 = vmul.f32 %v395, 0.01
        %v410 = vmul.f32 %v356, 0.01
        %v411 = vmul.f32 %v358, 0.01
        %v412 = vmul.f32 %v398, 0.01
        %v413 = vsel %vm401, %v352, %v407
        %v414 = vsel %vm402, %v354, %v408
        %v415 = vsel %vm403, %v395, %v409
        %v416 = vsel %vm404, %v356, %v410
        %v417 = vsel %vm405, %v358, %v411
        %v418 = vsel %vm406, %v398, %v412
        %v419 = vsel %vm220, %v413, 0.0
        %v420 = vsel %vm221, %v414, 0.0
        %v421 = vsel %vm222, %v415, 0.0
        %v422 = vsel %vm220, %v416, 0.0
        %v423 = vsel %vm221, %v417, 0.0
        %v424 = vsel %vm222, %v418, 0.0
        %425 = vrot.lane.b32.xlu0 %v419, 3
        %v426 = vpop.permute.xlu0 %425
        %427 = vrot.lane.b32.xlu0 %v422, 3
        %v428 = vpop.permute.xlu0 %427
        %429 = vrot.lane.b32.xlu0 %v420, 3
        %v430 = vpop.permute.xlu0 %429
        %431 = vrot.lane.b32.xlu0 %v423, 3
        %v432 = vpop.permute.xlu0 %431
        %433 = vrot.lane.b32.xlu0 %v421, 3
        %v434 = vpop.permute.xlu0 %433
        %435 = vrot.lane.b32.xlu0 %v424, 3
        %v436 = vpop.permute.xlu0 %435
        %vm437 = vcmp.lt.s32.totalorder %v205, 3
        %v438 = vsel %vm437, %v430, %v434
        %v439 = vsel %vm437, %v432, %v436
        %v440 = vsel %vm437, %v426, %v430
        %v441 = vsel %vm437, %v428, %v432
        %v442 = vsel %vm437, %v434, %v426
        %v443 = vsel %vm437, %v436, %v428
        %444 = vrot.lane.b32.xlu0 %v419, 125
        %v445 = vpop.permute.xlu0 %444
        %446 = vrot.lane.b32.xlu0 %v422, 125
        %v447 = vpop.permute.xlu0 %446
        %448 = vrot.lane.b32.xlu0 %v420, 125
        %v449 = vpop.permute.xlu0 %448
        %450 = vrot.lane.b32.xlu0 %v423, 125
        %v451 = vpop.permute.xlu0 %450
        %452 = vrot.lane.b32.xlu0 %v421, 125
        %v453 = vpop.permute.xlu0 %452
        %454 = vrot.lane.b32.xlu0 %v424, 125
        %v455 = vpop.permute.xlu0 %454
        %vm456 = vcmp.lt.s32.totalorder %v205, 125
        %v457 = vsel %vm456, %v449, %v453
        %v458 = vsel %vm456, %v451, %v455
        %v459 = vsel %vm456, %v445, %v449
        %v460 = vsel %vm456, %v447, %v451
        %v461 = vsel %vm456, %v453, %v445
        %v462 = vsel %vm456, %v455, %v447
        %v463 = vpack.c.bf16 %v443, %v442
        %v464 = vpack.c.bf16 %v441, %v440
        %v465 = vpack.c.bf16 %v439, %v438
        %v466 = vpack.c.bf16 %v422, %v419
        %v467 = vpack.c.bf16 %v423, %v420
        %v468 = vpack.c.bf16 %v424, %v421
        %v469 = vpack.c.bf16 %v460, %v459
        %v470 = vpack.c.bf16 %v458, %v457
        %v471 = vpack.c.bf16 %v462, %v461
        %s472 = scalar_lea.vmem %s1, 8
        %v473 = vld [vmem:[%s472] sm:$0xf]
        %v474 = vld [vmem:[%s472 + $0x4] sm:$0xf]
        %s475 = scalar_lea.vmem %s2, 16
        %v476 = vld [vmem:[%s475] sm:$0xff]
        %v477 = vld [vmem:[%s475 + $0x8] sm:$0xff]
        %479 = vset.pattern.permute.xlu0 0
        %480 = vperm.xlu0 %479, %v476
        %v481 = vpop.permute.xlu0 %480
        %484 = vset.pattern.permute.xlu0 0
        %485 = vperm.xlu0 %484, %v477
        %v486 = vpop.permute.xlu0 %485
        %v490 = vunpack.c.l.b16 %v473
        %v491 = vunpack.c.l.b16 %v474
        %v492 = vpack.c.b16 %v491, %v490
        %v494 = vsel %vm313, %v492, 0
        %496 = vmatprep.subr.bf16.mxu0 0
        %497 = vmatpush1.bf16.msra.mxu0 0
        %498 = vmatprep.subr.bf16.mxu0 0
        %499 = vmatpush1.bf16.msra.mxu0 0
        %500 = vmatprep.subr.bf16.mxu0 0
        %501 = vmatpush1.bf16.msra.mxu0 0
        %502 = vmatprep.subr.bf16.mxu0 0
        %503 = vmatpush1.bf16.msra.mxu0 0
        %504 = vmatprep.subr.bf16.mxu0 0
        %505 = vmatpush1.bf16.msra.mxu0 0
        %506 = vmatprep.subr.bf16.mxu0 %v470
        %507 = vmatpush1.bf16.msra.mxu0 %v469
        %508 = vmatprep.subr.bf16.mxu0 %v467
        %509 = vmatpush1.bf16.msra.mxu0 %v466
        %510 = vmatprep.subr.bf16.mxu0 %v464
        %511 = vmatpush1.bf16.msra.mxu0 %v463
        %512 = vmatprep.subr.bf16.mxu0 0
        %513 = vmatpush2.bf16.msra.mxu0 0
        %514 = vmatprep.subr.bf16.mxu0 0
        %515 = vmatpush2.bf16.msra.mxu0 0
        %516 = vmatprep.subr.bf16.mxu0 0
        %517 = vmatpush2.bf16.msra.mxu0 0
        %518 = vmatprep.subr.bf16.mxu0 0
        %519 = vmatpush2.bf16.msra.mxu0 0
        %520 = vmatprep.subr.bf16.mxu0 0
        %521 = vmatpush2.bf16.msra.mxu0 0
        %522 = vmatprep.subr.bf16.mxu0 0
        %523 = vmatpush2.bf16.msra.mxu0 0
        %524 = vmatprep.subr.bf16.mxu0 0
        %525 = vmatpush2.bf16.msra.mxu0 0
        %526 = vmatprep.subr.bf16.mxu0 0
        %527 = vmatpush2.bf16.msra.mxu0 0
        %528 = vmatprep.mubr.bf16.mxu0 0
        %529 = vmatmul.mubr.bf16.gmra.mxu0 %v494
        %v530 = vpop.f32.mrf.mxu0
        %v531 = vadd.f32 %v481, %v530
        %v532 = vpop.f32.mrf.mxu0
        %v533 = vadd.f32 %v481, %v532
        %v534 = vpop.f32.mrf.mxu0
        %v535 = vadd.f32 %v486, %v534
        %v536 = vpop.f32.mrf.mxu0
        %v537 = vadd.f32 %v486, %v536
        %538 = vdwg.mxu0
        %539 = vmatprep.subr.bf16.mxu0 0
        %540 = vmatpush1.bf16.msra.mxu0 0
        %541 = vmatprep.subr.bf16.mxu0 0
        %542 = vmatpush1.bf16.msra.mxu0 0
        %543 = vmatprep.subr.bf16.mxu0 0
        %544 = vmatpush1.bf16.msra.mxu0 0
        %545 = vmatprep.subr.bf16.mxu0 0
        %546 = vmatpush1.bf16.msra.mxu0 0
        %547 = vmatprep.subr.bf16.mxu0 0
        %548 = vmatpush1.bf16.msra.mxu0 0
        %549 = vmatprep.subr.bf16.mxu0 0
        %550 = vmatpush1.bf16.msra.mxu0 %v471
        %551 = vmatprep.subr.bf16.mxu0 0
        %552 = vmatpush1.bf16.msra.mxu0 %v468
        %553 = vmatprep.subr.bf16.mxu0 0
        %554 = vmatpush1.bf16.msra.mxu0 %v465
        %555 = vmatprep.subr.bf16.mxu0 0
        %556 = vmatpush2.bf16.msra.mxu0 0
        %557 = vmatprep.subr.bf16.mxu0 0
        %558 = vmatpush2.bf16.msra.mxu0 0
        %559 = vmatprep.subr.bf16.mxu0 0
        %560 = vmatpush2.bf16.msra.mxu0 0
        %561 = vmatprep.subr.bf16.mxu0 0
        %562 = vmatpush2.bf16.msra.mxu0 0
        %563 = vmatprep.subr.bf16.mxu0 0
        %564 = vmatpush2.bf16.msra.mxu0 0
        %565 = vmatprep.subr.bf16.mxu0 0
        %566 = vmatpush2.bf16.msra.mxu0 0
        %567 = vmatprep.subr.bf16.mxu0 0
        %568 = vmatpush2.bf16.msra.mxu0 0
        %569 = vmatprep.subr.bf16.mxu0 0
        %570 = vmatpush2.bf16.msra.mxu0 0
        %571 = vmatprep.mubr.bf16.mxu0 0
        %572 = vmatmul.mubr.bf16.gmra.mxu0 %v494
        %v573 = vpop.f32.mrf.mxu0
        %v574 = vadd.f32 %v481, %v573
        %v575 = vpop.f32.mrf.mxu0
        %v576 = vpop.f32.mrf.mxu0
        %v577 = vadd.f32 %v486, %v576
        %v578 = vpop.f32.mrf.mxu0
        %579 = vdwg.mxu0
        %v580 = vadd.f32 %v531, %v198
        %v581 = vadd.f32 %v533, %v199
        %v582 = vadd.f32 %v574, %v200
        %v583 = vadd.f32 %v535, %v201
        %v584 = vadd.f32 %v537, %v202
        %v585 = vadd.f32 %v577, %v203
        %vm586 = vcmp.ge.f32.partialorder %v580, 0.0
        %vm587 = vcmp.ge.f32.partialorder %v581, 0.0
        %vm588 = vcmp.ge.f32.partialorder %v582, 0.0
        %vm589 = vcmp.ge.f32.partialorder %v583, 0.0
        %vm590 = vcmp.ge.f32.partialorder %v584, 0.0
        %vm591 = vcmp.ge.f32.partialorder %v585, 0.0
        %v592 = vmul.f32 %v580, 0.01
        %v593 = vmul.f32 %v581, 0.01
        %v594 = vmul.f32 %v582, 0.01
        %v595 = vmul.f32 %v583, 0.01
        %v596 = vmul.f32 %v584, 0.01
        %v597 = vmul.f32 %v585, 0.01
        %v598 = vsel %vm586, %v580, %v592
        %v599 = vsel %vm587, %v581, %v593
        %v600 = vsel %vm588, %v582, %v594
        %v601 = vsel %vm589, %v583, %v595
        %v602 = vsel %vm590, %v584, %v596
        %v603 = vsel %vm591, %v585, %v597
        %v604 = vsel %vm220, %v598, 0.0
        %v605 = vsel %vm221, %v599, 0.0
        %v606 = vsel %vm222, %v600, 0.0
        %v607 = vsel %vm220, %v601, 0.0
        %v608 = vsel %vm221, %v602, 0.0
        %v609 = vsel %vm222, %v603, 0.0
        %610 = vrot.lane.b32.xlu0 %v604, 5
        %v611 = vpop.permute.xlu0 %610
        %612 = vrot.lane.b32.xlu0 %v607, 5
        %v613 = vpop.permute.xlu0 %612
        %614 = vrot.lane.b32.xlu0 %v605, 5
        %v615 = vpop.permute.xlu0 %614
        %616 = vrot.lane.b32.xlu0 %v608, 5
        %v617 = vpop.permute.xlu0 %616
        %618 = vrot.lane.b32.xlu0 %v606, 5
        %v619 = vpop.permute.xlu0 %618
        %620 = vrot.lane.b32.xlu0 %v609, 5
        %v621 = vpop.permute.xlu0 %620
        %vm622 = vcmp.lt.s32.totalorder %v205, 5
        %v623 = vsel %vm622, %v611, %v615
        %v624 = vsel %vm622, %v613, %v617
        %v625 = vsel %vm622, %v619, %v611
        %v626 = vsel %vm622, %v621, %v613
        %627 = vrot.lane.b32.xlu0 %v604, 123
        %v628 = vpop.permute.xlu0 %627
        %629 = vrot.lane.b32.xlu0 %v607, 123
        %v630 = vpop.permute.xlu0 %629
        %631 = vrot.lane.b32.xlu0 %v605, 123
        %v632 = vpop.permute.xlu0 %631
        %633 = vrot.lane.b32.xlu0 %v608, 123
        %v634 = vpop.permute.xlu0 %633
        %635 = vrot.lane.b32.xlu0 %v606, 123
        %v636 = vpop.permute.xlu0 %635
        %637 = vrot.lane.b32.xlu0 %v609, 123
        %v638 = vpop.permute.xlu0 %637
        %vm639 = vcmp.lt.s32.totalorder %v205, 123
        %v640 = vsel %vm639, %v632, %v636
        %v641 = vsel %vm639, %v634, %v638
        %v642 = vsel %vm639, %v628, %v632
        %v643 = vsel %vm639, %v630, %v634
        %v644 = vpack.c.bf16 %v626, %v625
        %v645 = vpack.c.bf16 %v624, %v623
        %v646 = vpack.c.bf16 %v607, %v604
        %v647 = vpack.c.bf16 %v608, %v605
        %v648 = vpack.c.bf16 %v643, %v642
        %v649 = vpack.c.bf16 %v641, %v640
        %s650 = scalar_lea.vmem %s1, 16
        %v651 = vld [vmem:[%s650] sm:$0xf]
        %v652 = vld [vmem:[%s650 + $0x4] sm:$0xf]
        %s653 = scalar_lea.vmem %s2, 32
        %v654 = vld [vmem:[%s653] sm:$0xff]
        %v655 = vld [vmem:[%s653 + $0x8] sm:$0xff]
        %657 = vset.pattern.permute.xlu0 0
        %658 = vperm.xlu0 %657, %v654
        %v659 = vpop.permute.xlu0 %658
        %662 = vset.pattern.permute.xlu0 0
        %663 = vperm.xlu0 %662, %v655
        %v664 = vpop.permute.xlu0 %663
        %v668 = vunpack.c.l.b16 %v651
        %v669 = vunpack.c.l.b16 %v652
        %v670 = vpack.c.b16 %v669, %v668
        %v672 = vsel %vm313, %v670, 0
        %674 = vmatprep.subr.bf16.mxu0 0
        %675 = vmatpush1.bf16.msra.mxu0 0
        %676 = vmatprep.subr.bf16.mxu0 0
        %677 = vmatpush1.bf16.msra.mxu0 0
        %678 = vmatprep.subr.bf16.mxu0 0
        %679 = vmatpush1.bf16.msra.mxu0 0
        %680 = vmatprep.subr.bf16.mxu0 0
        %681 = vmatpush1.bf16.msra.mxu0 0
        %682 = vmatprep.subr.bf16.mxu0 0
        %683 = vmatpush1.bf16.msra.mxu0 0
        %684 = vmatprep.subr.bf16.mxu0 %v649
        %685 = vmatpush1.bf16.msra.mxu0 %v648
        %686 = vmatprep.subr.bf16.mxu0 %v647
        %687 = vmatpush1.bf16.msra.mxu0 %v646
        %688 = vmatprep.subr.bf16.mxu0 %v645
        %689 = vmatpush1.bf16.msra.mxu0 %v644
        %690 = vmatprep.subr.bf16.mxu0 0
        %691 = vmatpush2.bf16.msra.mxu0 0
        %692 = vmatprep.subr.bf16.mxu0 0
        %693 = vmatpush2.bf16.msra.mxu0 0
        %694 = vmatprep.subr.bf16.mxu0 0
        %695 = vmatpush2.bf16.msra.mxu0 0
        %696 = vmatprep.subr.bf16.mxu0 0
        %697 = vmatpush2.bf16.msra.mxu0 0
        %698 = vmatprep.subr.bf16.mxu0 0
        %699 = vmatpush2.bf16.msra.mxu0 0
        %700 = vmatprep.subr.bf16.mxu0 0
        %701 = vmatpush2.bf16.msra.mxu0 0
        %702 = vmatprep.subr.bf16.mxu0 0
        %703 = vmatpush2.bf16.msra.mxu0 0
        %704 = vmatprep.subr.bf16.mxu0 0
        %705 = vmatpush2.bf16.msra.mxu0 0
        %706 = vmatprep.mubr.bf16.mxu0 0
        %707 = vmatmul.mubr.bf16.gmra.mxu0 %v672
        %v708 = vpop.f32.mrf.mxu0
        %v709 = vpop.f32.mrf.mxu0
        %v710 = vadd.f32 %v659, %v709
        %v711 = vpop.f32.mrf.mxu0
        %v712 = vpop.f32.mrf.mxu0
        %v713 = vadd.f32 %v664, %v712
        %714 = vdwg.mxu0
        %v715 = vadd.f32 %v710, %v581
        %v716 = vadd.f32 %v713, %v584
        %717 = vst [vmem:[%s187] sm:$0xff] %v715
        %718 = vst [vmem:[%s187 + $0x8] sm:$0xff] %v716
        %s719 = sand.u32 %s109, 1
        %s720 = scalar_lea.sflag [#allocation3], %s719
        %s721 = sand.u32 %s109, 1
        %s722 = smul.addr %s721, 16
        %s723 = scalar_lea.vmem [#allocation2], %s722
        // Predicated region
        $region33: #{residual_block_forward.1} parent=31 // pred_check
          %p724 = pneg %p119
        $region34: #{residual_block_forward.1} parent=31 // pred_check_branch
          %726 = sbr.rel (%p724) target = $region36
        $region35: #{residual_block_forward.1} parent=31 // pred_region
          %s728 = ssub.s32 256, 256
          %729 = vsyncadd %s720, %s728
          %s730 = smul.addr %s21, 2
          %s731 = sadd.s32 %s22, %s730
          %s732 = smul.addr %s731, 128
          %s733 = scalar_lea.hbm %s3, %s732
          %s734 = sshll.u32 %s723, 4
          %s735 = int_to_ptr.vmem [resolvable:$true] %s734
          %740 = dma.vmem_to_hbm [thread:$0]  %s735, 256, %s733, %s720, 128, 128, 8
        $region36: #{residual_block_forward.1} parent=31 // pred_fallthru
          _
      $region32: #{residual_block_forward.1} parent=5 // pred_fallthru
        _
      %p741 = scmp.le.s32.totalorder 2, %s12
      // Predicated region
      $region37: #{residual_block_forward.1} parent=5 // pred_check
        %p742 = pneg %p741
      $region38: #{residual_block_forward.1} parent=5 // pred_check_branch
        %744 = sbr.rel (%p742) target = $region40
      $region39: #{residual_block_forward.1} parent=5 // pred_region
        %s745 = ssub.s32 %s12, 2
        // Predicated region
        $region41: #{residual_block_forward.1} parent=39 // pred_check
          %p746 = pneg %p125
        $region42: #{residual_block_forward.1} parent=39 // pred_check_branch
          %748 = sbr.rel (%p746) target = $region44
        $region43: #{residual_block_forward.1} parent=39 // pred_region
          %s749 = sand.u32 %s110, 1
          %s750 = scalar_lea.sflag [#allocation3], %s749
          %s751 = sand.u32 %s110, 1
          %s752 = smul.addr %s751, 16
          %s753 = scalar_lea.vmem [#allocation2], %s752
          %754 = dma.done %s750, 256
        $region44: #{residual_block_forward.1} parent=39 // pred_fallthru
          _
      $region40: #{residual_block_forward.1} parent=5 // pred_fallthru
        _
    $region6: #{residual_block_forward.1} parent=1 // loop_footer
      %s16 = sadd.s32 1, %s12
    $region7: #{residual_block_forward.1} parent=1 // loop_footer_branch
      %11 = sbr.rel target = $region3
    $region8: #{residual_block_forward.1} parent=1 // loop_exit
      _
    %755 = vsyncpa [#allocation3], 1
    %s756 = scalar_lea.sflag [#allocation3], 1
    %757 = vsyncpa %s756, 1

</llo_original>
